<compile_context>
chip_gen: v7x
topology: tpu7x:2x2x1
jax: 0.10.0
libtpu: 0.0.40
codegen_flags: <defaults>
</compile_context>

<pallas_src>
import functools

import jax
import jax.numpy as jnp
from jax.experimental import pallas as pl
from jax.experimental.pallas import tpu as pltpu


_LANE = 128
_SUBLANE = 8


def _round_up(v, m):
    return ((v + m - 1) // m) * m


def _fused_encoder_kernel(x_ref, w_ref, b_ref, o_ref, acc_ref):
    """One (batch-tile, D-tile) grid step: acc += X_tile @ W_tile, bias+store at end.

    x_ref: [tb, td]   (input dtype)
    w_ref: [td, Kp]   (compute dtype; bf16 for the fast MXU path)
    b_ref: [1, Kp]    (f32)
    o_ref: [tb, Kp]   (output dtype)
    acc_ref: [tb, Kp] f32 scratch accumulator
    """
    d = pl.program_id(1)

    @pl.when(d == 0)
    def _init():
        acc_ref[...] = jnp.zeros_like(acc_ref)

    # Cast X to the weight dtype for the MXU (no-op when both are f32);
    # accumulation is always f32 via preferred_element_type.
    x = x_ref[...].astype(w_ref.dtype)
    acc_ref[...] += jnp.dot(x, w_ref[...], preferred_element_type=jnp.float32)

    @pl.when(d == pl.num_programs(1) - 1)
    def _finalize():
        # Bias add and final cast in f32 (v5e has no bf16 VPU datapath).
        o_ref[...] = (acc_ref[...] + b_ref[...].astype(jnp.float32)).astype(o_ref.dtype)


def _pick_reduction_tile(D, block_d):
    """Largest multiple-of-128 tile <= block_d that divides D; else full D."""
    if D <= block_d:
        return D
    t = (block_d // _LANE) * _LANE
    while t >= _LANE:
        if D % t == 0:
            return t
        t -= _LANE
    # TODO(synk): mask the ragged K-tail instead of falling back to full-D tiles.
    return D


def _derive_vmem_limit(tb, td, kp, x_itemsize, w_itemsize, o_itemsize, w_bufs):
    """VMEM budget from the actual (layout-padded) tile footprint + slack."""
    kp_p = _round_up(kp, _LANE)
    td_lane = _round_up(td, _LANE)
    td_sub = _round_up(td, _SUBLANE)
    tb_p = _round_up(tb, _SUBLANE)
    footprint = (
        2 * tb_p * td_lane * x_itemsize        # double-buffered X tile
        + w_bufs * td_sub * kp_p * w_itemsize  # fused weight (1 or 2 buffers)
        + w_bufs * _SUBLANE * kp_p * 4         # fused bias
        + 2 * tb_p * kp_p * o_itemsize         # double-buffered output tile
        + tb_p * kp_p * 4                      # f32 accumulator scratch
    )
    limit = int(footprint * 1.25) + (2 << 20)
    limit = max(limit, 16 << 20)
    try:
        cap = int(0.9 * pltpu.get_tpu_info().vmem_capacity_bytes)
    except Exception:
        cap = 64 << 20  # safe for every generation (v7x physical VMEM)
    return min(limit, cap)


def fused_linear_heads(x, w_fused, b_fused, *, block_b=512, block_d=2048):
    """Compute X @ W_fused + b_fused in one Pallas call.

    Grid = (batch tiles ["parallel"], reduction tiles ["arbitrary"]).
    """
    B, D = x.shape
    Dw, Kp = w_fused.shape
    assert Dw == D, (Dw, D)

    # Batch tile: <= block_b, multiple of 8, balanced across tiles so v7x's
    # two TensorCores both get work whenever B needs more than one tile.
    if B <= block_b:
        tb = B
    else:
        nb_target = pl.cdiv(B, block_b)
        tb = _round_up(pl.cdiv(B, nb_target), _SUBLANE)
    td = _pick_reduction_tile(D, block_d)

    nb = pl.cdiv(B, tb)
    nd = pl.cdiv(D, td)
    grid = (nb, nd)

    x_spec = pl.BlockSpec((tb, td), lambda b, d: (b, d))
    if nd == 1:
        # Weight/bias never change across the grid -> single-buffer them.
        w_spec = pl.BlockSpec((td, Kp), lambda b, d: (0, 0),
                              pipeline_mode=pl.Buffered(1))
        w_bufs = 1
    else:
        # Weight is streamed along the reduction axis -> keep double buffering.
        w_spec = pl.BlockSpec((td, Kp), lambda b, d: (d, 0))
        w_bufs = 2
    b_spec = pl.BlockSpec((1, Kp), lambda b, d: (0, 0),
                          pipeline_mode=pl.Buffered(1))
    out_spec = pl.BlockSpec((tb, Kp), lambda b, d: (b, 0))

    vmem_limit = _derive_vmem_limit(
        tb, td, Kp,
        jnp.dtype(x.dtype).itemsize,
        jnp.dtype(w_fused.dtype).itemsize,
        jnp.dtype(x.dtype).itemsize,
        w_bufs,
    )

    return pl.pallas_call(
        _fused_encoder_kernel,
        out_shape=jax.ShapeDtypeStruct((B, Kp), x.dtype),
        grid=grid,
        in_specs=[x_spec, w_spec, b_spec],
        out_specs=out_spec,
        scratch_shapes=[pltpu.VMEM((tb, Kp), jnp.float32)],
        compiler_params=pltpu.CompilerParams(
            dimension_semantics=("parallel", "arbitrary"),
            vmem_limit_bytes=vmem_limit,
        ),
    )(x, w_fused, b_fused)


@functools.partial(jax.jit, static_argnames=("ks",))
def _encoder_forward(x, w_fused, b_fused, ks):
    """One fused Pallas matmul, then static per-head slices of the compact slab."""
    slab = fused_linear_heads(x, w_fused, b_fused)
    outputs = []
    offset = 0
    for k_val in ks:
        outputs.append(slab[:, offset:offset + k_val])
        offset += k_val
    return outputs


@functools.partial(jax.jit, static_argnames=("k_total",))
def _encoder_forward_fused(x, w_fused, b_fused, k_total):
    """Single [B, K_total] slab (no per-head materialization) for consumers."""
    return fused_linear_heads(x, w_fused, b_fused)[:, :k_total]


class NeuralEncoderPallas:
    """JAX/Pallas equivalent of the PyTorch NeuralEncoder module."""

    def __init__(self, input_size, ks, key, dtype=jnp.float32, compute_dtype=None):
        # The PyTorch reference also sorts ks, so the head order matches exactly.
        self.ks = tuple(sorted(ks))
        self.min_k_val = min(self.ks)
        self.input_size = input_size
        self.dtype = dtype
        # bf16 MXU path for realistic sizes; keep f32 at toy D (noise there).
        if compute_dtype is None:
            compute_dtype = jnp.bfloat16 if input_size >= 256 else dtype
        self.compute_dtype = compute_dtype

        # Per-head parameters (PyTorch-Linear-like init), kept in f32 for
        # reference checking.  Weight stored as [D, k] so forward is X @ W + b.
        self.params = []
        for k_val in self.ks:
            key, wk, bk = jax.random.split(key, 3)
            bound = 1.0 / (input_size ** 0.5)
            w = jax.random.uniform(
                wk, (input_size, k_val), dtype, minval=-bound, maxval=bound)
            b = jax.random.uniform(
                bk, (k_val,), dtype, minval=-bound, maxval=bound)
            self.params.append((w, b))

        # Fuse heads along K; pad K only to a multiple of 8 (NOT 128) so the
        # output slab writeback is ~8x smaller.  Weight stored in compute dtype
        # (bf16 halves its HBM stream on v6e/v7x); bias stays f32.
        self.k_total = sum(self.ks)
        k_pad = _round_up(max(self.k_total, _SUBLANE), _SUBLANE)
        w_fused = jnp.zeros((input_size, k_pad), jnp.float32)
        b_fused = jnp.zeros((1, k_pad), jnp.float32)
        offset = 0
        for (w, b), k_val in zip(self.params, self.ks):
            w_fused = w_fused.at[:, offset:offset + k_val].set(w.astype(jnp.float32))
            b_fused = b_fused.at[:, offset:offset + k_val].set(b.astype(jnp.float32))
            offset += k_val
        self.w_fused = w_fused.astype(self.compute_dtype)
        self.b_fused = b_fused  # f32

    def forward_fused(self, X):
        """Return the compact [B, K_total] slab (preferred for downstream use)."""
        return _encoder_forward_fused(X, self.w_fused, self.b_fused,
                                      k_total=self.k_total)

    def __call__(self, X):
        # Returns a list of hidden states, one per K in self.ks (PyTorch parity).
        return _encoder_forward(X, self.w_fused, self.b_fused, ks=self.ks)


if __name__ == "__main__":
    key = jax.random.PRNGKey(0)
    k_x, k_params = jax.random.split(key)

    batch = 8
    input_size = 32
    ks = [3, 4, 5]

    X = jax.random.normal(k_x, (batch, input_size), jnp.float32)

    ok = True

    # f32 path (default at this toy input_size): tight reference check.
    enc = NeuralEncoderPallas(input_size, ks, k_params)
    outs = jax.block_until_ready(enc(X))
    for (w, b), out, k_val in zip(enc.params, outs, enc.ks):
        ref = X @ w + b
        ok &= out.shape == (batch, k_val)
        ok &= bool(jnp.allclose(out, ref, atol=1e-5, rtol=1e-5))

    # Fused-slab API check.
    slab = jax.block_until_ready(enc.forward_fused(X))
    ref_slab = jnp.concatenate([X @ w + b[None, :] for (w, b) in enc.params], axis=1)
    ok &= slab.shape == (batch, sum(enc.ks))
    ok &= bool(jnp.allclose(slab, ref_slab, atol=1e-5, rtol=1e-5))

    # bf16 MXU path (what v6e/v7x would use at realistic D): looser tolerance.
    enc_bf = NeuralEncoderPallas(input_size, ks, k_params,
                                 compute_dtype=jnp.bfloat16)
    outs_bf = jax.block_until_ready(enc_bf(X))
    for (w, b), out, k_val in zip(enc_bf.params, outs_bf, enc_bf.ks):
        ref = X @ w + b
        ok &= out.shape == (batch, k_val)
        ok &= bool(jnp.allclose(out, ref, atol=5e-2, rtol=5e-2))

    if ok:
        print("KERNEL_OK")
</pallas_src>

<mosaic_0001>
module attributes {stable_mosaic.version = 11 : i64} {
  func.func @_fused_encoder_kernel(%arg0: i32, %arg1: i32, %arg2: memref<8x32xf32, #tpu.memory_space<vmem>>, %arg3: memref<32x16xf32, #tpu.memory_space<vmem>>, %arg4: memref<1x16xf32, #tpu.memory_space<vmem>>, %arg5: memref<8x16xf32, #tpu.memory_space<vmem>>, %arg6: memref<8x16xf32, #tpu.memory_space<vmem>>) attributes {dimension_semantics = [#tpu.dimension_semantics<parallel>, #tpu.dimension_semantics<arbitrary>], iteration_bounds = array<i64: 1, 1>, scalar_prefetch = 0 : i64, scratch_operands = 1 : i64, tpu.core_type = #tpu.core_type<tc>, window_params = [{transform_indices = @transform_0, window_bounds = array<i64: 8, 32>}, {pipeline_mode = #tpu.pipeline_mode<synchronous>, transform_indices = @transform_1, window_bounds = array<i64: 32, 16>}, {pipeline_mode = #tpu.pipeline_mode<synchronous>, transform_indices = @transform_2, window_bounds = array<i64: 1, 16>}, {transform_indices = @transform_3, window_bounds = array<i64: 8, 16>}]} {
    %c0_i32 = arith.constant 0 : i32
    %0 = arith.cmpi eq, %arg1, %c0_i32 : i32
    %1 = arith.extui %0 : i1 to i32
    %c0_i32_0 = arith.constant 0 : i32
    %2 = arith.cmpi ne, %1, %c0_i32_0 : i32
    scf.if %2 {
      %cst_10 = arith.constant 0.000000e+00 : f32
      %12 = vector.broadcast %cst_10 : f32 to vector<8x16xf32>
      %c0_11 = arith.constant 0 : index
      %c0_12 = arith.constant 0 : index
      %13 = vector.load %arg6[%c0_11, %c0_12] : memref<8x16xf32, #tpu.memory_space<vmem>>, vector<8x16xf32>
      tpu.vector_store %arg6[%c0_11, %c0_12], %12 {strides = array<i32>} : memref<8x16xf32, #tpu.memory_space<vmem>>, vector<8x16xf32>,
    } else {
    }
    %c0 = arith.constant 0 : index
    %c0_1 = arith.constant 0 : index
    %3 = vector.load %arg2[%c0, %c0_1] : memref<8x32xf32, #tpu.memory_space<vmem>>, vector<8x32xf32>
    %c0_2 = arith.constant 0 : index
    %c0_3 = arith.constant 0 : index
    %4 = vector.load %arg6[%c0_2, %c0_3] : memref<8x16xf32, #tpu.memory_space<vmem>>, vector<8x16xf32>
    %c0_4 = arith.constant 0 : index
    %c0_5 = arith.constant 0 : index
    %5 = vector.load %arg3[%c0_4, %c0_5] : memref<32x16xf32, #tpu.memory_space<vmem>>, vector<32x16xf32>
    %cst = arith.constant dense<0.000000e+00> : vector<8x16xf32>
    %6 = tpu.matmul %3, %5, %cst {dimension_numbers = #tpu.dot_dimension_numbers<[1], [0], [0], [1], [0, 0, 1, 1], [], []>} : vector<8x32xf32>, vector<32x16xf32>, vector<8x16xf32> -> vector<8x16xf32>
    %7 = arith.addf %4, %6 : vector<8x16xf32>
    %c0_6 = arith.constant 0 : index
    %c0_7 = arith.constant 0 : index
    %8 = vector.load %arg6[%c0_6, %c0_7] : memref<8x16xf32, #tpu.memory_space<vmem>>, vector<8x16xf32>
    tpu.vector_store %arg6[%c0_6, %c0_7], %7 {strides = array<i32>} : memref<8x16xf32, #tpu.memory_space<vmem>>, vector<8x16xf32>,
    %c0_i32_8 = arith.constant 0 : i32
    %9 = arith.cmpi eq, %arg1, %c0_i32_8 : i32
    %10 = arith.extui %9 : i1 to i32
    %c0_i32_9 = arith.constant 0 : i32
    %11 = arith.cmpi ne, %10, %c0_i32_9 : i32
    scf.if %11 {
      %c0_10 = arith.constant 0 : index
      %c0_11 = arith.constant 0 : index
      %12 = vector.load %arg6[%c0_10, %c0_11] : memref<8x16xf32, #tpu.memory_space<vmem>>, vector<8x16xf32>
      %c0_12 = arith.constant 0 : index
      %c0_13 = arith.constant 0 : index
      %13 = vector.load %arg4[%c0_12, %c0_13] : memref<1x16xf32, #tpu.memory_space<vmem>>, vector<1x16xf32>
      %14 = vector.broadcast %13 : vector<1x16xf32> to vector<8x16xf32>
      %15 = arith.addf %12, %14 : vector<8x16xf32>
      %c0_14 = arith.constant 0 : index
      %c0_15 = arith.constant 0 : index
      %16 = vector.load %arg5[%c0_14, %c0_15] : memref<8x16xf32, #tpu.memory_space<vmem>>, vector<8x16xf32>
      tpu.vector_store %arg5[%c0_14, %c0_15], %15 {strides = array<i32>} : memref<8x16xf32, #tpu.memory_space<vmem>>, vector<8x16xf32>,
    } else {
    }
    return
  }
  func.func @transform_0(%arg0: i32, %arg1: i32) -> (i32, i32) {
    %c0_i32 = arith.constant 0 : i32
    return %arg0, %arg1 : i32, i32
  }
  func.func @transform_1(%arg0: i32, %arg1: i32) -> (i32, i32) {
    %c0_i32 = arith.constant 0 : i32
    %c0_i32_0 = arith.constant 0 : i32
    %c0_i32_1 = arith.constant 0 : i32
    return %c0_i32, %c0_i32_0 : i32, i32
  }
  func.func @transform_2(%arg0: i32, %arg1: i32) -> (i32, i32) {
    %c0_i32 = arith.constant 0 : i32
    %c0_i32_0 = arith.constant 0 : i32
    %c0_i32_1 = arith.constant 0 : i32
    return %c0_i32, %c0_i32_0 : i32, i32
  }
  func.func @transform_3(%arg0: i32, %arg1: i32) -> (i32, i32) {
    %c0_i32 = arith.constant 0 : i32
    %c0_i32_0 = arith.constant 0 : i32
    return %arg0, %c0_i32 : i32, i32
  }
}

</mosaic_0001>

<llo_original>
// kernel: _encoder_forward.1
$region0: #{_encoder_forward.1}
  #allocation0 [shape = 'u32[]', space=smem, size = 0x4, offset = 0x4, fixed_abs, tag = 'smem constant byte address 0x4 - core index']
  #allocation1 [shape = 'u32[144,128]{1,0:T(1,128)}', space=vmem, size = 0x12000, scoped, tag = 'internal scratch']
  #allocation2 [shape = 'f32[8,16]{1,0:T(8,128)}', space=vmem, size = 0x1000, scoped, tag = 'scratch operand']
  %s0 = inlined_call_operand.vmem [shape: f32[8,32], index: 0, kind: input, shape index: {}]
  %s1 = inlined_call_operand.vmem [shape: f32[32,16], index: 1, kind: input, shape index: {}]
  %s2 = inlined_call_operand.vmem [shape: f32[1,16], index: 2, kind: input, shape index: {}]
  %s3 = inlined_call_operand.vmem [shape: f32[8,16], index: 3, kind: output, shape index: {}]
  %s4 = sld [smem:[#allocation0]]
  $region30: #{_encoder_forward.1} parent=0
    _
  %s6 = ssub.s32 1, %s4
  %s7 = scalar_select 0, %s6, %s4
  // Predicated region
  $region2: #{_encoder_forward.1} parent=0 // pred_check
    _
  $region3: #{_encoder_forward.1} parent=0 // pred_check_branch
    %9 = sbr.rel (0) target = $region5
  $region4: #{_encoder_forward.1} parent=0 // pred_region
    _
  $region5: #{_encoder_forward.1} parent=0 // pred_fallthru
    _
  // Predicated region
  $region6: #{_encoder_forward.1} parent=0 // pred_check
    _
  $region7: #{_encoder_forward.1} parent=0 // pred_check_branch
    %11 = sbr.rel (0) target = $region9
  $region8: #{_encoder_forward.1} parent=0 // pred_region
    _
  $region9: #{_encoder_forward.1} parent=0 // pred_fallthru
    _
  // Predicated region
  $region10: #{_encoder_forward.1} parent=0 // pred_check
    _
  $region11: #{_encoder_forward.1} parent=0 // pred_check_branch
    %13 = sbr.rel (0) target = $region13
  $region12: #{_encoder_forward.1} parent=0 // pred_region
    _
  $region13: #{_encoder_forward.1} parent=0 // pred_fallthru
    _
  %p14 = scmp.eq.s32.totalorder 0, 0
  // Predicated region
  $region14: #{_encoder_forward.1} parent=0 // pred_check
    %p15 = pneg %p14
  $region15: #{_encoder_forward.1} parent=0 // pred_check_branch
    %17 = sbr.rel (%p15) target = $region17
  $region16: #{_encoder_forward.1} parent=0 // pred_region
    %vm18 = vcmask 130048
    %19 = vst.msk [vmem:[#allocation2] sm:$0xff] %vm18, 0.0
  $region17: #{_encoder_forward.1} parent=0 // pred_fallthru
    _
  %v20 = vld [vmem:[%s0] sm:$0xff]
  %v21 = vld [vmem:[#allocation2] sm:$0xff]
  %v22 = vld [vmem:[%s1] sm:$0xff]
  %v23 = vld [vmem:[%s1 + $0x8] sm:$0xff]
  %v24 = vld [vmem:[%s1 + $0x10] sm:$0xff]
  %v25 = vld [vmem:[%s1 + $0x18] sm:$0xff]
  %vm26 = vcmask 261120
  %v28 = vsel %vm26, %v20, 0
  %30 = vmatprep.subr.mxu0 0.0
  %31 = vmatpush1.msra.mxu0 %v22
  %32 = vmatprep.subr.mxu0 0.0
  %33 = vmatpush1.msra.mxu0 %v23
  %34 = vmatprep.subr.mxu0 0.0
  %35 = vmatpush1.msra.mxu0 %v24
  %36 = vmatprep.subr.mxu0 0.0
  %37 = vmatpush1.msra.mxu0 %v25
  %38 = vmatprep.subr.mxu0 0.0
  %39 = vmatpush1.msra.mxu0 0.0
  %40 = vmatprep.subr.mxu0 0.0
  %41 = vmatpush1.msra.mxu0 0.0
  %42 = vmatprep.subr.mxu0 0.0
  %43 = vmatpush1.msra.mxu0 0.0
  %44 = vmatprep.subr.mxu0 0.0
  %45 = vmatpush1.msra.mxu0 0.0
  %46 = vmatprep.subr.mxu0 0.0
  %47 = vmatpush1.msra.mxu0 0.0
  %48 = vmatprep.subr.mxu0 0.0
  %49 = vmatpush1.msra.mxu0 0.0
  %50 = vmatprep.subr.mxu0 0.0
  %51 = vmatpush1.msra.mxu0 0.0
  %52 = vmatprep.subr.mxu0 0.0
  %53 = vmatpush1.msra.mxu0 0.0
  %54 = vmatprep.subr.mxu0 0.0
  %55 = vmatpush1.msra.mxu0 0.0
  %56 = vmatprep.subr.mxu0 0.0
  %57 = vmatpush1.msra.mxu0 0.0
  %58 = vmatprep.subr.mxu0 0.0
  %59 = vmatpush1.msra.mxu0 0.0
  %60 = vmatprep.subr.mxu0 0.0
  %61 = vmatpush1.msra.mxu0 0.0
  %62 = vmatprep.subr.mxu0 0.0
  %63 = vmatpush1.msra.mxu0 0.0
  %64 = vmatprep.subr.mxu0 0.0
  %65 = vmatpush1.msra.mxu0 0.0
  %66 = vmatprep.subr.mxu0 0.0
  %67 = vmatpush1.msra.mxu0 0.0
  %68 = vmatprep.subr.mxu0 0.0
  %69 = vmatpush1.msra.mxu0 0.0
  %70 = vmatprep.subr.mxu0 0.0
  %71 = vmatpush1.msra.mxu0 0.0
  %72 = vmatprep.subr.mxu0 0.0
  %73 = vmatpush1.msra.mxu0 0.0
  %74 = vmatprep.subr.mxu0 0.0
  %75 = vmatpush1.msra.mxu0 0.0
  %76 = vmatprep.subr.mxu0 0.0
  %77 = vmatpush1.msra.mxu0 0.0
  %78 = vmatprep.subr.mxu0 0.0
  %79 = vmatpush1.msra.mxu0 0.0
  %80 = vmatprep.subr.mxu0 0.0
  %81 = vmatpush1.msra.mxu0 0.0
  %82 = vmatprep.subr.mxu0 0.0
  %83 = vmatpush1.msra.mxu0 0.0
  %84 = vmatprep.subr.mxu0 0.0
  %85 = vmatpush1.msra.mxu0 0.0
  %86 = vmatprep.subr.mxu0 0.0
  %87 = vmatpush1.msra.mxu0 0.0
  %88 = vmatprep.subr.mxu0 0.0
  %89 = vmatpush1.msra.mxu0 0.0
  %90 = vmatprep.subr.mxu0 0.0
  %91 = vmatpush1.msra.mxu0 0.0
  %92 = vmatprep.subr.mxu0 0.0
  %93 = vmatpush1.msra.mxu0 0.0
  %94 = vmatprep.mubr.f32.mxu0 0.0
  %95 = vmatmul.mubr.f32.gmra.mrb[0].mxu0 %v28
  %v96 = vpop.f32.mrb[0].mxu0
  %v97 = vadd.f32 0.0, %v96
  %v98 = vpop.f32.mrb[0].mxu0
  %99 = vdwg.mxu0
  %v100 = vadd.f32 %v21, %v97
  %vm101 = vcmask 130048
  %102 = vst.msk [vmem:[#allocation2] sm:$0xff] %vm101, %v100
  // Predicated region
  $region18: #{_encoder_forward.1} parent=0 // pred_check
    %p103 = pneg %p14
  $region19: #{_encoder_forward.1} parent=0 // pred_check_branch
    %105 = sbr.rel (%p103) target = $region21
  $region20: #{_encoder_forward.1} parent=0 // pred_region
    %v106 = vld [vmem:[#allocation2] sm:$0xff]
    %v107 = vld [vmem:[%s2] sm:$0x1]
    %v109 = vlaneseq
    %v110 = vshrl.u32 %v109, 7
    %v111 = vsub.s32 0, %v110
    %v112 = vrot.slane %v107, %v111
    %v114 = vadd.f32 %v106, %v112
    %115 = vst.msk [vmem:[%s3] sm:$0xff] %vm101, %v114
  $region21: #{_encoder_forward.1} parent=0 // pred_fallthru
    _
  // Predicated region
  $region22: #{_encoder_forward.1} parent=0 // pred_check
    _
  $region23: #{_encoder_forward.1} parent=0 // pred_check_branch
    %117 = sbr.rel (0) target = $region25
  $region24: #{_encoder_forward.1} parent=0 // pred_region
    _
  $region25: #{_encoder_forward.1} parent=0 // pred_fallthru
    _
  // Predicated region
  $region26: #{_encoder_forward.1} parent=0 // pred_check
    _
  $region27: #{_encoder_forward.1} parent=0 // pred_check_branch
    %119 = sbr.rel (0) target = $region29
  $region28: #{_encoder_forward.1} parent=0 // pred_region
    _
  $region29: #{_encoder_forward.1} parent=0 // pred_fallthru
    _

</llo_original>
